<compile_context>
chip_gen: v6e
topology: v6e:2x2x1
jax: 0.10.0
libtpu: 0.0.40
codegen_flags: <defaults>
</compile_context>

<pallas_src>
import jax
import jax.numpy as jnp
from jax import lax
from jax.experimental import pallas as pl
from jax.experimental.pallas import tpu as pltpu


def janet_kernel(emb_ref,    # (T, B, E) whole time-major embedded sequence
                 wx_ref,     # (E, 2H)  fused [Wfx | Wcx]
                 wh_ref,     # (H, 2H)  fused [Wfh | Wch]
                 b_ref,      # (1, 2H)  fused [bf  | bc ]
                 wfc_ref,    # (H, C)
                 bfc_ref,    # (1, C)
                 out_ref,    # (B, C)
                 prex_ref):  # (T, B, 2H) VMEM scratch: precomputed input projections
    T, B, E = emb_ref.shape
    H = wh_ref.shape[0]

    wh = wh_ref[...]

    # Hoist the h-independent input projection for every timestep into ONE wide
    # MXU matmul (bias folded in).  The recurrence then needs only one matmul
    # per step.  Broadcast of the bias happens once (JAX does not CSE
    # broadcast_in_dim inside loops).
    x_all = emb_ref[...].reshape(T * B, E)                          # (T*B, E)
    pre_x = (jnp.dot(x_all, wx_ref[...], preferred_element_type=jnp.float32)
             + jnp.broadcast_to(b_ref[...], (T * B, 2 * H)))        # (T*B, 2H)
    prex_ref[...] = pre_x.reshape(T, B, 2 * H)

    def step(t, carry):
        h, c = carry
        pre = prex_ref[t] + jnp.dot(h, wh, preferred_element_type=jnp.float32)  # (B, 2H)
        f_t = jax.nn.sigmoid(pre[:, :H])
        c_tilde = jnp.tanh(pre[:, H:])
        c_new = f_t * c + (1.0 - f_t) * c_tilde
        h_new = jnp.tanh(c_new)
        return h_new, c_new

    h0 = jnp.zeros((B, H), jnp.float32)
    c0 = jnp.zeros((B, H), jnp.float32)
    h_final, _ = lax.fori_loop(0, T, step, (h0, c0), unroll=True)

    logits = (jnp.dot(h_final, wfc_ref[...], preferred_element_type=jnp.float32)
              + bfc_ref[...])
    out_ref[...] = logits.astype(out_ref.dtype)


def janet_net_forward(x_ids, emb_table, params):
    """x_ids: (B, T) int32 token indices."""
    (wfx, wfh, bf, wcx, wch, bc, wfc, bfc) = params
    B, T = x_ids.shape
    H = wfh.shape[0]
    C = wfc.shape[1]

    # Embedding gather directly in time-major layout: (T, B, E).
    embedded_tm = emb_table[x_ids.T]

    # Fuse forget / candidate projections into single wide matmuls.
    wx = jnp.concatenate([wfx, wcx], axis=1)   # (E, 2H)
    wh = jnp.concatenate([wfh, wch], axis=1)   # (H, 2H)
    b = jnp.concatenate([bf, bc], axis=1)      # (1, 2H)

    vmem = pl.BlockSpec(memory_space=pltpu.MemorySpace.VMEM)

    out = pl.pallas_call(
        janet_kernel,
        out_shape=jax.ShapeDtypeStruct((B, C), jnp.float32),
        in_specs=[vmem] * 6,
        out_specs=vmem,
        scratch_shapes=[pltpu.VMEM((T, B, 2 * H), jnp.float32)],
    )(embedded_tm, wx, wh, b, wfc, bfc)
    return out


def janet_net_reference(x_ids, emb_table, params):
    """Pure-JAX reference mirroring the PyTorch forward."""
    (wfx, wfh, bf, wcx, wch, bc, wfc, bfc) = params
    embedded = emb_table[x_ids]              # (B, T, E)
    B, T, _ = embedded.shape
    H = wfh.shape[0]
    h = jnp.zeros((B, H), jnp.float32)
    c = jnp.zeros((B, H), jnp.float32)
    for t in range(T):
        x_t = embedded[:, t, :]
        f = jax.nn.sigmoid(x_t @ wfx + h @ wfh + bf)
        c_tilde = jnp.tanh(x_t @ wcx + h @ wch + bc)
        c = f * c + (1.0 - f) * c_tilde
        h = jnp.tanh(c)
    return h @ wfc + bfc


if __name__ == "__main__":
    # Small shapes consistent with the module's forward.
    vocab_size = 50
    embed_dim = 16     # input_size of the JANET cell
    hidden_size = 32
    num_classes = 4
    batch = 8
    seq_len = 8

    key = jax.random.PRNGKey(0)
    ks = jax.random.split(key, 10)

    emb_table = jax.random.normal(ks[0], (vocab_size, embed_dim), jnp.float32) * 0.1

    in_dim = embed_dim + hidden_size
    # nn.Linear(input+hidden, hidden) weight is (H, E+H); we store the transpose,
    # split into the x-part (E, H) and h-part (H, H).
    scale = 1.0 / jnp.sqrt(jnp.float32(in_dim))
    wf_full = jax.random.uniform(ks[1], (in_dim, hidden_size), jnp.float32, -scale, scale)
    wc_full = jax.random.uniform(ks[2], (in_dim, hidden_size), jnp.float32, -scale, scale)
    wfx, wfh = wf_full[:embed_dim], wf_full[embed_dim:]
    wcx, wch = wc_full[:embed_dim], wc_full[embed_dim:]
    bf = jax.random.uniform(ks[3], (1, hidden_size), jnp.float32, -scale, scale)
    bc = jax.random.uniform(ks[4], (1, hidden_size), jnp.float32, -scale, scale)

    fc_scale = 1.0 / jnp.sqrt(jnp.float32(hidden_size))
    wfc = jax.random.uniform(ks[5], (hidden_size, num_classes), jnp.float32, -fc_scale, fc_scale)
    bfc = jax.random.uniform(ks[6], (1, num_classes), jnp.float32, -fc_scale, fc_scale)

    params = (wfx, wfh, bf, wcx, wch, bc, wfc, bfc)

    x_ids = jax.random.randint(ks[7], (batch, seq_len), 0, vocab_size, jnp.int32)

    out = janet_net_forward(x_ids, emb_table, params)
    out = jax.block_until_ready(out)

    ref = janet_net_reference(x_ids, emb_table, params)
    assert out.shape == (batch, num_classes)
    assert jnp.allclose(out, ref, atol=1e-5, rtol=1e-5), "Pallas output mismatch vs reference"

    print("KERNEL_OK")
</pallas_src>

<mosaic_0001>
module attributes {stable_mosaic.version = 11 : i64} {
  func.func @janet_kernel(%arg0: memref<8x8x16xf32, #tpu.memory_space<vmem>>, %arg1: memref<16x64xf32, #tpu.memory_space<vmem>>, %arg2: memref<32x64xf32, #tpu.memory_space<vmem>>, %arg3: memref<1x64xf32, #tpu.memory_space<vmem>>, %arg4: memref<32x4xf32, #tpu.memory_space<vmem>>, %arg5: memref<1x4xf32, #tpu.memory_space<vmem>>, %arg6: memref<8x4xf32, #tpu.memory_space<vmem>>, %arg7: memref<8x8x64xf32, #tpu.memory_space<vmem>>) attributes {dimension_semantics = [], scalar_prefetch = 0 : i64, scratch_operands = 1 : i64, tpu.core_type = #tpu.core_type<tc>} {
    %c0 = arith.constant 0 : index
    %c0_0 = arith.constant 0 : index
    %0 = vector.load %arg2[%c0, %c0_0] : memref<32x64xf32, #tpu.memory_space<vmem>>, vector<32x64xf32>
    %c0_1 = arith.constant 0 : index
    %c0_2 = arith.constant 0 : index
    %c0_3 = arith.constant 0 : index
    %1 = vector.load %arg0[%c0_1, %c0_2, %c0_3] : memref<8x8x16xf32, #tpu.memory_space<vmem>>, vector<8x8x16xf32>
    %2 = vector.shape_cast %1 : vector<8x8x16xf32> to vector<64x16xf32>
    %c0_4 = arith.constant 0 : index
    %c0_5 = arith.constant 0 : index
    %3 = vector.load %arg1[%c0_4, %c0_5] : memref<16x64xf32, #tpu.memory_space<vmem>>, vector<16x64xf32>
    %cst = arith.constant dense<0.000000e+00> : vector<64x64xf32>
    %4 = tpu.matmul %2, %3, %cst {dimension_numbers = #tpu.dot_dimension_numbers<[1], [0], [0], [1], [0, 0, 1, 1], [], []>} : vector<64x16xf32>, vector<16x64xf32>, vector<64x64xf32> -> vector<64x64xf32>
    %c0_6 = arith.constant 0 : index
    %c0_7 = arith.constant 0 : index
    %5 = vector.load %arg3[%c0_6, %c0_7] : memref<1x64xf32, #tpu.memory_space<vmem>>, vector<1x64xf32>
    %6 = vector.shape_cast %5 : vector<1x64xf32> to vector<1x64xf32>
    %7 = vector.broadcast %6 : vector<1x64xf32> to vector<64x64xf32>
    %8 = arith.addf %4, %7 : vector<64x64xf32>
    %9 = vector.shape_cast %8 : vector<64x64xf32> to vector<8x8x64xf32>
    %c0_8 = arith.constant 0 : index
    %c0_9 = arith.constant 0 : index
    %c0_10 = arith.constant 0 : index
    %10 = vector.load %arg7[%c0_8, %c0_9, %c0_10] : memref<8x8x64xf32, #tpu.memory_space<vmem>>, vector<8x8x64xf32>
    tpu.vector_store %arg7[%c0_8, %c0_9, %c0_10], %9 {strides = array<i32>} : memref<8x8x64xf32, #tpu.memory_space<vmem>>, vector<8x8x64xf32>,
    %cst_11 = arith.constant 0.000000e+00 : f32
    %11 = vector.broadcast %cst_11 : f32 to vector<8x32xf32>
    %cst_12 = arith.constant 0.000000e+00 : f32
    %12 = vector.broadcast %cst_12 : f32 to vector<8x32xf32>
    %c0_i32 = arith.constant 0 : i32
    %13 = arith.index_cast %c0_i32 : i32 to index
    %c0_13 = arith.constant 0 : index
    %c0_14 = arith.constant 0 : index
    %14 = vector.load %arg7[%13, %c0_13, %c0_14] : memref<8x8x64xf32, #tpu.memory_space<vmem>>, vector<1x8x64xf32>
    %15 = vector.shape_cast %14 : vector<1x8x64xf32> to vector<8x64xf32>
    %cst_15 = arith.constant dense<0.000000e+00> : vector<8x64xf32>
    %16 = tpu.matmul %11, %0, %cst_15 {dimension_numbers = #tpu.dot_dimension_numbers<[1], [0], [0], [1], [0, 0, 1, 1], [], []>} : vector<8x32xf32>, vector<32x64xf32>, vector<8x64xf32> -> vector<8x64xf32>
    %17 = arith.addf %15, %16 : vector<8x64xf32>
    %18 = vector.extract_strided_slice %17 {offsets = [0, 0], sizes = [8, 32], strides = [1, 1]} : vector<8x64xf32> to vector<8x32xf32>
    %19 = arith.negf %18 : vector<8x32xf32>
    %20 = math.exp %19 : vector<8x32xf32>
    %cst_16 = arith.constant 1.000000e+00 : f32
    %21 = vector.broadcast %cst_16 : f32 to vector<8x32xf32>
    %22 = arith.addf %21, %20 : vector<8x32xf32>
    %23 = arith.divf %21, %22 : vector<8x32xf32>
    %24 = vector.extract_strided_slice %17 {offsets = [0, 32], sizes = [8, 32], strides = [1, 1]} : vector<8x64xf32> to vector<8x32xf32>
    %25 = math.tanh %24 : vector<8x32xf32>
    %26 = arith.mulf %23, %12 : vector<8x32xf32>
    %cst_17 = arith.constant 1.000000e+00 : f32
    %27 = vector.broadcast %cst_17 : f32 to vector<8x32xf32>
    %28 = arith.subf %27, %23 : vector<8x32xf32>
    %29 = arith.mulf %28, %25 : vector<8x32xf32>
    %30 = arith.addf %26, %29 : vector<8x32xf32>
    %31 = math.tanh %30 : vector<8x32xf32>
    %c1_i32 = arith.constant 1 : i32
    %32 = arith.index_cast %c1_i32 : i32 to index
    %c0_18 = arith.constant 0 : index
    %c0_19 = arith.constant 0 : index
    %33 = vector.load %arg7[%32, %c0_18, %c0_19] : memref<8x8x64xf32, #tpu.memory_space<vmem>>, vector<1x8x64xf32>
    %34 = vector.shape_cast %33 : vector<1x8x64xf32> to vector<8x64xf32>
    %cst_20 = arith.constant dense<0.000000e+00> : vector<8x64xf32>
    %35 = tpu.matmul %31, %0, %cst_20 {dimension_numbers = #tpu.dot_dimension_numbers<[1], [0], [0], [1], [0, 0, 1, 1], [], []>} : vector<8x32xf32>, vector<32x64xf32>, vector<8x64xf32> -> vector<8x64xf32>
    %36 = arith.addf %34, %35 : vector<8x64xf32>
    %37 = vector.extract_strided_slice %36 {offsets = [0, 0], sizes = [8, 32], strides = [1, 1]} : vector<8x64xf32> to vector<8x32xf32>
    %38 = arith.negf %37 : vector<8x32xf32>
    %39 = math.exp %38 : vector<8x32xf32>
    %cst_21 = arith.constant 1.000000e+00 : f32
    %40 = vector.broadcast %cst_21 : f32 to vector<8x32xf32>
    %41 = arith.addf %40, %39 : vector<8x32xf32>
    %42 = arith.divf %40, %41 : vector<8x32xf32>
    %43 = vector.extract_strided_slice %36 {offsets = [0, 32], sizes = [8, 32], strides = [1, 1]} : vector<8x64xf32> to vector<8x32xf32>
    %44 = math.tanh %43 : vector<8x32xf32>
    %45 = arith.mulf %42, %30 : vector<8x32xf32>
    %cst_22 = arith.constant 1.000000e+00 : f32
    %46 = vector.broadcast %cst_22 : f32 to vector<8x32xf32>
    %47 = arith.subf %46, %42 : vector<8x32xf32>
    %48 = arith.mulf %47, %44 : vector<8x32xf32>
    %49 = arith.addf %45, %48 : vector<8x32xf32>
    %50 = math.tanh %49 : vector<8x32xf32>
    %c2_i32 = arith.constant 2 : i32
    %51 = arith.index_cast %c2_i32 : i32 to index
    %c0_23 = arith.constant 0 : index
    %c0_24 = arith.constant 0 : index
    %52 = vector.load %arg7[%51, %c0_23, %c0_24] : memref<8x8x64xf32, #tpu.memory_space<vmem>>, vector<1x8x64xf32>
    %53 = vector.shape_cast %52 : vector<1x8x64xf32> to vector<8x64xf32>
    %cst_25 = arith.constant dense<0.000000e+00> : vector<8x64xf32>
    %54 = tpu.matmul %50, %0, %cst_25 {dimension_numbers = #tpu.dot_dimension_numbers<[1], [0], [0], [1], [0, 0, 1, 1], [], []>} : vector<8x32xf32>, vector<32x64xf32>, vector<8x64xf32> -> vector<8x64xf32>
    %55 = arith.addf %53, %54 : vector<8x64xf32>
    %56 = vector.extract_strided_slice %55 {offsets = [0, 0], sizes = [8, 32], strides = [1, 1]} : vector<8x64xf32> to vector<8x32xf32>
    %57 = arith.negf %56 : vector<8x32xf32>
    %58 = math.exp %57 : vector<8x32xf32>
    %cst_26 = arith.constant 1.000000e+00 : f32
    %59 = vector.broadcast %cst_26 : f32 to vector<8x32xf32>
    %60 = arith.addf %59, %58 : vector<8x32xf32>
    %61 = arith.divf %59, %60 : vector<8x32xf32>
    %62 = vector.extract_strided_slice %55 {offsets = [0, 32], sizes = [8, 32], strides = [1, 1]} : vector<8x64xf32> to vector<8x32xf32>
    %63 = math.tanh %62 : vector<8x32xf32>
    %64 = arith.mulf %61, %49 : vector<8x32xf32>
    %cst_27 = arith.constant 1.000000e+00 : f32
    %65 = vector.broadcast %cst_27 : f32 to vector<8x32xf32>
    %66 = arith.subf %65, %61 : vector<8x32xf32>
    %67 = arith.mulf %66, %63 : vector<8x32xf32>
    %68 = arith.addf %64, %67 : vector<8x32xf32>
    %69 = math.tanh %68 : vector<8x32xf32>
    %c3_i32 = arith.constant 3 : i32
    %70 = arith.index_cast %c3_i32 : i32 to index
    %c0_28 = arith.constant 0 : index
    %c0_29 = arith.constant 0 : index
    %71 = vector.load %arg7[%70, %c0_28, %c0_29] : memref<8x8x64xf32, #tpu.memory_space<vmem>>, vector<1x8x64xf32>
    %72 = vector.shape_cast %71 : vector<1x8x64xf32> to vector<8x64xf32>
    %cst_30 = arith.constant dense<0.000000e+00> : vector<8x64xf32>
    %73 = tpu.matmul %69, %0, %cst_30 {dimension_numbers = #tpu.dot_dimension_numbers<[1], [0], [0], [1], [0, 0, 1, 1], [], []>} : vector<8x32xf32>, vector<32x64xf32>, vector<8x64xf32> -> vector<8x64xf32>
    %74 = arith.addf %72, %73 : vector<8x64xf32>
    %75 = vector.extract_strided_slice %74 {offsets = [0, 0], sizes = [8, 32], strides = [1, 1]} : vector<8x64xf32> to vector<8x32xf32>
    %76 = arith.negf %75 : vector<8x32xf32>
    %77 = math.exp %76 : vector<8x32xf32>
    %cst_31 = arith.constant 1.000000e+00 : f32
    %78 = vector.broadcast %cst_31 : f32 to vector<8x32xf32>
    %79 = arith.addf %78, %77 : vector<8x32xf32>
    %80 = arith.divf %78, %79 : vector<8x32xf32>
    %81 = vector.extract_strided_slice %74 {offsets = [0, 32], sizes = [8, 32], strides = [1, 1]} : vector<8x64xf32> to vector<8x32xf32>
    %82 = math.tanh %81 : vector<8x32xf32>
    %83 = arith.mulf %80, %68 : vector<8x32xf32>
    %cst_32 = arith.constant 1.000000e+00 : f32
    %84 = vector.broadcast %cst_32 : f32 to vector<8x32xf32>
    %85 = arith.subf %84, %80 : vector<8x32xf32>
    %86 = arith.mulf %85, %82 : vector<8x32xf32>
    %87 = arith.addf %83, %86 : vector<8x32xf32>
    %88 = math.tanh %87 : vector<8x32xf32>
    %c4_i32 = arith.constant 4 : i32
    %89 = arith.index_cast %c4_i32 : i32 to index
    %c0_33 = arith.constant 0 : index
    %c0_34 = arith.constant 0 : index
    %90 = vector.load %arg7[%89, %c0_33, %c0_34] : memref<8x8x64xf32, #tpu.memory_space<vmem>>, vector<1x8x64xf32>
    %91 = vector.shape_cast %90 : vector<1x8x64xf32> to vector<8x64xf32>
    %cst_35 = arith.constant dense<0.000000e+00> : vector<8x64xf32>
    %92 = tpu.matmul %88, %0, %cst_35 {dimension_numbers = #tpu.dot_dimension_numbers<[1], [0], [0], [1], [0, 0, 1, 1], [], []>} : vector<8x32xf32>, vector<32x64xf32>, vector<8x64xf32> -> vector<8x64xf32>
    %93 = arith.addf %91, %92 : vector<8x64xf32>
    %94 = vector.extract_strided_slice %93 {offsets = [0, 0], sizes = [8, 32], strides = [1, 1]} : vector<8x64xf32> to vector<8x32xf32>
    %95 = arith.negf %94 : vector<8x32xf32>
    %96 = math.exp %95 : vector<8x32xf32>
    %cst_36 = arith.constant 1.000000e+00 : f32
    %97 = vector.broadcast %cst_36 : f32 to vector<8x32xf32>
    %98 = arith.addf %97, %96 : vector<8x32xf32>
    %99 = arith.divf %97, %98 : vector<8x32xf32>
    %100 = vector.extract_strided_slice %93 {offsets = [0, 32], sizes = [8, 32], strides = [1, 1]} : vector<8x64xf32> to vector<8x32xf32>
    %101 = math.tanh %100 : vector<8x32xf32>
    %102 = arith.mulf %99, %87 : vector<8x32xf32>
    %cst_37 = arith.constant 1.000000e+00 : f32
    %103 = vector.broadcast %cst_37 : f32 to vector<8x32xf32>
    %104 = arith.subf %103, %99 : vector<8x32xf32>
    %105 = arith.mulf %104, %101 : vector<8x32xf32>
    %106 = arith.addf %102, %105 : vector<8x32xf32>
    %107 = math.tanh %106 : vector<8x32xf32>
    %c5_i32 = arith.constant 5 : i32
    %108 = arith.index_cast %c5_i32 : i32 to index
    %c0_38 = arith.constant 0 : index
    %c0_39 = arith.constant 0 : index
    %109 = vector.load %arg7[%108, %c0_38, %c0_39] : memref<8x8x64xf32, #tpu.memory_space<vmem>>, vector<1x8x64xf32>
    %110 = vector.shape_cast %109 : vector<1x8x64xf32> to vector<8x64xf32>
    %cst_40 = arith.constant dense<0.000000e+00> : vector<8x64xf32>
    %111 = tpu.matmul %107, %0, %cst_40 {dimension_numbers = #tpu.dot_dimension_numbers<[1], [0], [0], [1], [0, 0, 1, 1], [], []>} : vector<8x32xf32>, vector<32x64xf32>, vector<8x64xf32> -> vector<8x64xf32>
    %112 = arith.addf %110, %111 : vector<8x64xf32>
    %113 = vector.extract_strided_slice %112 {offsets = [0, 0], sizes = [8, 32], strides = [1, 1]} : vector<8x64xf32> to vector<8x32xf32>
    %114 = arith.negf %113 : vector<8x32xf32>
    %115 = math.exp %114 : vector<8x32xf32>
    %cst_41 = arith.constant 1.000000e+00 : f32
    %116 = vector.broadcast %cst_41 : f32 to vector<8x32xf32>
    %117 = arith.addf %116, %115 : vector<8x32xf32>
    %118 = arith.divf %116, %117 : vector<8x32xf32>
    %119 = vector.extract_strided_slice %112 {offsets = [0, 32], sizes = [8, 32], strides = [1, 1]} : vector<8x64xf32> to vector<8x32xf32>
    %120 = math.tanh %119 : vector<8x32xf32>
    %121 = arith.mulf %118, %106 : vector<8x32xf32>
    %cst_42 = arith.constant 1.000000e+00 : f32
    %122 = vector.broadcast %cst_42 : f32 to vector<8x32xf32>
    %123 = arith.subf %122, %118 : vector<8x32xf32>
    %124 = arith.mulf %123, %120 : vector<8x32xf32>
    %125 = arith.addf %121, %124 : vector<8x32xf32>
    %126 = math.tanh %125 : vector<8x32xf32>
    %c6_i32 = arith.constant 6 : i32
    %127 = arith.index_cast %c6_i32 : i32 to index
    %c0_43 = arith.constant 0 : index
    %c0_44 = arith.constant 0 : index
    %128 = vector.load %arg7[%127, %c0_43, %c0_44] : memref<8x8x64xf32, #tpu.memory_space<vmem>>, vector<1x8x64xf32>
    %129 = vector.shape_cast %128 : vector<1x8x64xf32> to vector<8x64xf32>
    %cst_45 = arith.constant dense<0.000000e+00> : vector<8x64xf32>
    %130 = tpu.matmul %126, %0, %cst_45 {dimension_numbers = #tpu.dot_dimension_numbers<[1], [0], [0], [1], [0, 0, 1, 1], [], []>} : vector<8x32xf32>, vector<32x64xf32>, vector<8x64xf32> -> vector<8x64xf32>
    %131 = arith.addf %129, %130 : vector<8x64xf32>
    %132 = vector.extract_strided_slice %131 {offsets = [0, 0], sizes = [8, 32], strides = [1, 1]} : vector<8x64xf32> to vector<8x32xf32>
    %133 = arith.negf %132 : vector<8x32xf32>
    %134 = math.exp %133 : vector<8x32xf32>
    %cst_46 = arith.constant 1.000000e+00 : f32
    %135 = vector.broadcast %cst_46 : f32 to vector<8x32xf32>
    %136 = arith.addf %135, %134 : vector<8x32xf32>
    %137 = arith.divf %135, %136 : vector<8x32xf32>
    %138 = vector.extract_strided_slice %131 {offsets = [0, 32], sizes = [8, 32], strides = [1, 1]} : vector<8x64xf32> to vector<8x32xf32>
    %139 = math.tanh %138 : vector<8x32xf32>
    %140 = arith.mulf %137, %125 : vector<8x32xf32>
    %cst_47 = arith.constant 1.000000e+00 : f32
    %141 = vector.broadcast %cst_47 : f32 to vector<8x32xf32>
    %142 = arith.subf %141, %137 : vector<8x32xf32>
    %143 = arith.mulf %142, %139 : vector<8x32xf32>
    %144 = arith.addf %140, %143 : vector<8x32xf32>
    %145 = math.tanh %144 : vector<8x32xf32>
    %c7_i32 = arith.constant 7 : i32
    %146 = arith.index_cast %c7_i32 : i32 to index
    %c0_48 = arith.constant 0 : index
    %c0_49 = arith.constant 0 : index
    %147 = vector.load %arg7[%146, %c0_48, %c0_49] : memref<8x8x64xf32, #tpu.memory_space<vmem>>, vector<1x8x64xf32>
    %148 = vector.shape_cast %147 : vector<1x8x64xf32> to vector<8x64xf32>
    %cst_50 = arith.constant dense<0.000000e+00> : vector<8x64xf32>
    %149 = tpu.matmul %145, %0, %cst_50 {dimension_numbers = #tpu.dot_dimension_numbers<[1], [0], [0], [1], [0, 0, 1, 1], [], []>} : vector<8x32xf32>, vector<32x64xf32>, vector<8x64xf32> -> vector<8x64xf32>
    %150 = arith.addf %148, %149 : vector<8x64xf32>
    %151 = vector.extract_strided_slice %150 {offsets = [0, 0], sizes = [8, 32], strides = [1, 1]} : vector<8x64xf32> to vector<8x32xf32>
    %152 = arith.negf %151 : vector<8x32xf32>
    %153 = math.exp %152 : vector<8x32xf32>
    %cst_51 = arith.constant 1.000000e+00 : f32
    %154 = vector.broadcast %cst_51 : f32 to vector<8x32xf32>
    %155 = arith.addf %154, %153 : vector<8x32xf32>
    %156 = arith.divf %154, %155 : vector<8x32xf32>
    %157 = vector.extract_strided_slice %150 {offsets = [0, 32], sizes = [8, 32], strides = [1, 1]} : vector<8x64xf32> to vector<8x32xf32>
    %158 = math.tanh %157 : vector<8x32xf32>
    %159 = arith.mulf %156, %144 : vector<8x32xf32>
    %cst_52 = arith.constant 1.000000e+00 : f32
    %160 = vector.broadcast %cst_52 : f32 to vector<8x32xf32>
    %161 = arith.subf %160, %156 : vector<8x32xf32>
    %162 = arith.mulf %161, %158 : vector<8x32xf32>
    %163 = arith.addf %159, %162 : vector<8x32xf32>
    %164 = math.tanh %163 : vector<8x32xf32>
    %c8_i32 = arith.constant 8 : i32
    %c0_53 = arith.constant 0 : index
    %c0_54 = arith.constant 0 : index
    %165 = vector.load %arg4[%c0_53, %c0_54] : memref<32x4xf32, #tpu.memory_space<vmem>>, vector<32x4xf32>
    %cst_55 = arith.constant dense<0.000000e+00> : vector<8x4xf32>
    %166 = tpu.matmul %164, %165, %cst_55 {dimension_numbers = #tpu.dot_dimension_numbers<[1], [0], [0], [1], [0, 0, 1, 1], [], []>} : vector<8x32xf32>, vector<32x4xf32>, vector<8x4xf32> -> vector<8x4xf32>
    %c0_56 = arith.constant 0 : index
    %c0_57 = arith.constant 0 : index
    %167 = vector.load %arg5[%c0_56, %c0_57] : memref<1x4xf32, #tpu.memory_space<vmem>>, vector<1x4xf32>
    %168 = vector.broadcast %167 : vector<1x4xf32> to vector<8x4xf32>
    %169 = arith.addf %166, %168 : vector<8x4xf32>
    %c0_58 = arith.constant 0 : index
    %c0_59 = arith.constant 0 : index
    %170 = vector.load %arg6[%c0_58, %c0_59] : memref<8x4xf32, #tpu.memory_space<vmem>>, vector<8x4xf32>
    tpu.vector_store %arg6[%c0_58, %c0_59], %169 {strides = array<i32>} : memref<8x4xf32, #tpu.memory_space<vmem>>, vector<8x4xf32>,
    return
  }
}

</mosaic_0001>

<llo_original>
// kernel: tpu_custom_call.1
$region0: #{tpu_custom_call.1}
  #allocation0 [shape = 'u32[]', space=smem, size = 0x4, offset = 0x4, fixed_abs, tag = 'smem constant byte address 0x4 - core index']
  #allocation1 [shape = 'u32[144,128]{1,0:T(1,128)}', space=vmem, size = 0x12000, scoped, tag = 'internal scratch']
  #allocation2 [shape = 'f32[8,8,64]{2,1,0:T(8,128)}', space=vmem, size = 0x8000, scoped, tag = 'scratch operand']
  %s0 = inlined_call_operand.hbm [shape: f32[8,8,16], index: 0, kind: input, shape index: {}]
  %s1 = inlined_call_operand.hbm [shape: f32[16,64], index: 1, kind: input, shape index: {}]
  %s2 = inlined_call_operand.vmem [shape: f32[32,64], index: 2, kind: input, shape index: {}]
  %s3 = inlined_call_operand.vmem [shape: f32[1,64], index: 3, kind: input, shape index: {}]
  %s4 = inlined_call_operand.vmem [shape: f32[32,4], index: 4, kind: input, shape index: {}]
  %s5 = inlined_call_operand.vmem [shape: f32[1,4], index: 5, kind: input, shape index: {}]
  %s6 = inlined_call_operand.vmem [shape: f32[8,4], index: 6, kind: output, shape index: {}]
  %s7 = sld [smem:[#allocation0]]
  $region42: #{tpu_custom_call.1} parent=0
    _
  %s9 = ssub.s32 1, %s7
  %s10 = scalar_select 0, %s9, %s7
  $region1: #{tpu_custom_call.1} parent=0
    #allocation3 [shape = 'u8[32768]{0}', space=vmem, size = 0x8000, scoped, tag = 'input window, operand 0, single buffered']
    #allocation4 [shape = 's32[1]{0}', space=sflag, size = 0x4, scoped, tag = 'scoped memory for tpu_custom_call.1']
    #allocation5 [shape = 'u8[8192]{0}', space=vmem, size = 0x2000, scoped, tag = 'input window, operand 1, single buffered']
    #allocation6 [shape = 's32[1]{0}', space=sflag, size = 0x4, scoped, tag = 'scoped memory for tpu_custom_call.1']
    %11 = vsyncpa [#allocation4], 0
    %12 = vsyncpa [#allocation6], 0
    // Predicated region
    $region2: #{tpu_custom_call.1} parent=1 // pred_check
      _
    $region3: #{tpu_custom_call.1} parent=1 // pred_check_branch
      %14 = sbr.rel (0) target = $region5
    $region4: #{tpu_custom_call.1} parent=1 // pred_region
      %s16 = ssub.s32 1024, 1024
      %17 = vsyncadd [#allocation4], %s16
      %s18 = sshll.u32 [#allocation3], 4
      %s19 = int_to_ptr.vmem [resolvable:$true] %s18
      %24 = dma.hbm_to_vmem [thread:$0]  %s0, 1024, %s19, [#allocation4], 128, 128, 8
    $region5: #{tpu_custom_call.1} parent=1 // pred_fallthru
      _
    // Predicated region
    $region6: #{tpu_custom_call.1} parent=1 // pred_check
      _
    $region7: #{tpu_custom_call.1} parent=1 // pred_check_branch
      %26 = sbr.rel (0) target = $region9
    $region8: #{tpu_custom_call.1} parent=1 // pred_region
      %s28 = ssub.s32 256, 256
      %29 = vsyncadd [#allocation6], %s28
      %s30 = sshll.u32 [#allocation5], 4
      %s31 = int_to_ptr.vmem [resolvable:$true] %s30
      %36 = dma.hbm_to_vmem [thread:$0]  %s1, 256, %s31, [#allocation6], 128, 128, 8
    $region9: #{tpu_custom_call.1} parent=1 // pred_fallthru
      _
    // Predicated region
    $region10: #{tpu_custom_call.1} parent=1 // pred_check
      _
    $region11: #{tpu_custom_call.1} parent=1 // pred_check_branch
      %38 = sbr.rel (0) target = $region13
    $region12: #{tpu_custom_call.1} parent=1 // pred_region
      _
    $region13: #{tpu_custom_call.1} parent=1 // pred_fallthru
      _
    // Predicated region
    $region14: #{tpu_custom_call.1} parent=1 // pred_check
      _
    $region15: #{tpu_custom_call.1} parent=1 // pred_check_branch
      %40 = sbr.rel (0) target = $region17
    $region16: #{tpu_custom_call.1} parent=1 // pred_region
      _
    $region17: #{tpu_custom_call.1} parent=1 // pred_fallthru
      _
    // Predicated region
    $region18: #{tpu_custom_call.1} parent=1 // pred_check
      _
    $region19: #{tpu_custom_call.1} parent=1 // pred_check_branch
      %42 = sbr.rel (0) target = $region21
    $region20: #{tpu_custom_call.1} parent=1 // pred_region
      _
    $region21: #{tpu_custom_call.1} parent=1 // pred_fallthru
      _
    // Predicated region
    $region22: #{tpu_custom_call.1} parent=1 // pred_check
      _
    $region23: #{tpu_custom_call.1} parent=1 // pred_check_branch
      %44 = sbr.rel (0) target = $region25
    $region24: #{tpu_custom_call.1} parent=1 // pred_region
      _
    $region25: #{tpu_custom_call.1} parent=1 // pred_fallthru
      _
    // Predicated region
    $region26: #{tpu_custom_call.1} parent=1 // pred_check
      _
    $region27: #{tpu_custom_call.1} parent=1 // pred_check_branch
      %46 = sbr.rel (0) target = $region29
    $region28: #{tpu_custom_call.1} parent=1 // pred_region
      %47 = dma.done [#allocation4], 1024
    $region29: #{tpu_custom_call.1} parent=1 // pred_fallthru
      _
    // Predicated region
    $region30: #{tpu_custom_call.1} parent=1 // pred_check
      _
    $region31: #{tpu_custom_call.1} parent=1 // pred_check_branch
      %49 = sbr.rel (0) target = $region33
    $region32: #{tpu_custom_call.1} parent=1 // pred_region
      %50 = dma.done [#allocation6], 256
    $region33: #{tpu_custom_call.1} parent=1 // pred_fallthru
      _
    %v51 = vld [vmem:[%s2] sm:$0xff]
    %v52 = vld [vmem:[%s2 + $0x8] sm:$0xff]
    %v53 = vld [vmem:[%s2 + $0x10] sm:$0xff]
    %v54 = vld [vmem:[%s2 + $0x18] sm:$0xff]
    %v55 = vld [vmem:[#allocation3] sm:$0xff]
    %v56 = vld [vmem:[#allocation3 + $0x8] sm:$0xff]
    %v57 = vld [vmem:[#allocation3 + $0x10] sm:$0xff]
    %v58 = vld [vmem:[#allocation3 + $0x18] sm:$0xff]
    %v59 = vld [vmem:[#allocation3 + $0x20] sm:$0xff]
    %v60 = vld [vmem:[#allocation3 + $0x28] sm:$0xff]
    %v61 = vld [vmem:[#allocation3 + $0x30] sm:$0xff]
    %v62 = vld [vmem:[#allocation3 + $0x38] sm:$0xff]
    %v63 = vld [vmem:[#allocation5] sm:$0xff]
    %v64 = vld [vmem:[#allocation5 + $0x8] sm:$0xff]
    %v65 = vld [vmem:[%s3] sm:$0x1]
    %v67 = vlaneseq
    %v68 = vshrl.u32 %v67, 7
    %v69 = vsub.s32 0, %v68
    %v70 = vrot.slane %v65, %v69
    %vm72 = vcmask 130048
    %v74 = vsel %vm72, %v55, 0
    %v77 = vsel %vm72, %v56, 0
    %v80 = vsel %vm72, %v57, 0
    %v83 = vsel %vm72, %v58, 0
    %v86 = vsel %vm72, %v59, 0
    %v89 = vsel %vm72, %v60, 0
    %v92 = vsel %vm72, %v61, 0
    %v95 = vsel %vm72, %v62, 0
    %97 = vmatprep.subr.mxu0 0.0
    %98 = vmatpush1.msra.mxu0 0.0
    %99 = vmatprep.subr.mxu0 0.0
    %100 = vmatpush1.msra.mxu0 0.0
    %101 = vmatprep.subr.mxu0 0.0
    %102 = vmatpush1.msra.mxu0 0.0
    %103 = vmatprep.subr.mxu0 0.0
    %104 = vmatpush1.msra.mxu0 0.0
    %105 = vmatprep.subr.mxu0 0.0
    %106 = vmatpush1.msra.mxu0 0.0
    %107 = vmatprep.subr.mxu0 0.0
    %108 = vmatpush1.msra.mxu0 0.0
    %109 = vmatprep.subr.mxu0 0.0
    %110 = vmatpush1.msra.mxu0 0.0
    %111 = vmatprep.subr.mxu0 0.0
    %112 = vmatpush1.msra.mxu0 0.0
    %113 = vmatprep.subr.mxu0 0.0
    %114 = vmatpush1.msra.mxu0 0.0
    %115 = vmatprep.subr.mxu0 0.0
    %116 = vmatpush1.msra.mxu0 0.0
    %117 = vmatprep.subr.mxu0 0.0
    %118 = vmatpush1.msra.mxu0 0.0
    %119 = vmatprep.subr.mxu0 0.0
    %120 = vmatpush1.msra.mxu0 0.0
    %121 = vmatprep.subr.mxu0 0.0
    %122 = vmatpush1.msra.mxu0 0.0
    %123 = vmatprep.subr.mxu0 0.0
    %124 = vmatpush1.msra.mxu0 0.0
    %125 = vmatprep.subr.mxu0 0.0
    %126 = vmatpush1.msra.mxu0 %v64
    %127 = vmatprep.subr.mxu0 0.0
    %128 = vmatpush1.msra.mxu0 %v63
    %129 = vmatprep.subr.mxu0 0.0
    %130 = vmatpush2.msra.mxu0 0.0
    %131 = vmatprep.subr.mxu0 0.0
    %132 = vmatpush2.msra.mxu0 0.0
    %133 = vmatprep.subr.mxu0 0.0
    %134 = vmatpush2.msra.mxu0 0.0
    %135 = vmatprep.subr.mxu0 0.0
    %136 = vmatpush2.msra.mxu0 0.0
    %137 = vmatprep.subr.mxu0 0.0
    %138 = vmatpush2.msra.mxu0 0.0
    %139 = vmatprep.subr.mxu0 0.0
    %140 = vmatpush2.msra.mxu0 0.0
    %141 = vmatprep.subr.mxu0 0.0
    %142 = vmatpush2.msra.mxu0 0.0
    %143 = vmatprep.subr.mxu0 0.0
    %144 = vmatpush2.msra.mxu0 0.0
    %145 = vmatprep.subr.mxu0 0.0
    %146 = vmatpush2.msra.mxu0 0.0
    %147 = vmatprep.subr.mxu0 0.0
    %148 = vmatpush2.msra.mxu0 0.0
    %149 = vmatprep.subr.mxu0 0.0
    %150 = vmatpush2.msra.mxu0 0.0
    %151 = vmatprep.subr.mxu0 0.0
    %152 = vmatpush2.msra.mxu0 0.0
    %153 = vmatprep.subr.mxu0 0.0
    %154 = vmatpush2.msra.mxu0 0.0
    %155 = vmatprep.subr.mxu0 0.0
    %156 = vmatpush2.msra.mxu0 0.0
    %157 = vmatprep.subr.mxu0 0.0
    %158 = vmatpush2.msra.mxu0 0.0
    %159 = vmatprep.subr.mxu0 0.0
    %160 = vmatpush2.msra.mxu0 0.0
    %161 = vmatprep.mubr.f32.mxu0 0.0
    %162 = vmatmul.mubr.f32.gmra.mxu0 %v74
    %v163 = vpop.f32.mrf.mxu0
    %v164 = vadd.f32 %v70, %v163
    %v165 = vpop.f32.mrf.mxu0
    %166 = vmatprep.mubr.f32.mxu0 0.0
    %167 = vmatmul.mubr.f32.gmra.mxu0 %v77
    %v168 = vpop.f32.mrf.mxu0
    %v169 = vadd.f32 %v70, %v168
    %v170 = vpop.f32.mrf.mxu0
    %171 = vmatprep.mubr.f32.mxu0 0.0
    %172 = vmatmul.mubr.f32.gmra.mxu0 %v80
    %v173 = vpop.f32.mrf.mxu0
    %v174 = vadd.f32 %v70, %v173
    %v175 = vpop.f32.mrf.mxu0
    %176 = vmatprep.mubr.f32.mxu0 0.0
    %177 = vmatmul.mubr.f32.gmra.mxu0 %v83
    %v178 = vpop.f32.mrf.mxu0
    %v179 = vadd.f32 %v70, %v178
    %v180 = vpop.f32.mrf.mxu0
    %181 = vmatprep.mubr.f32.mxu0 0.0
    %182 = vmatmul.mubr.f32.gmra.mxu0 %v86
    %v183 = vpop.f32.mrf.mxu0
    %v184 = vadd.f32 %v70, %v183
    %v185 = vpop.f32.mrf.mxu0
    %186 = vmatprep.mubr.f32.mxu0 0.0
    %187 = vmatmul.mubr.f32.gmra.mxu0 %v89
    %v188 = vpop.f32.mrf.mxu0
    %v189 = vadd.f32 %v70, %v188
    %v190 = vpop.f32.mrf.mxu0
    %191 = vmatprep.mubr.f32.mxu0 0.0
    %192 = vmatmul.mubr.f32.gmra.mxu0 %v92
    %v193 = vpop.f32.mrf.mxu0
    %v194 = vadd.f32 %v70, %v193
    %v195 = vpop.f32.mrf.mxu0
    %196 = vmatprep.mubr.f32.mxu0 0.0
    %197 = vmatmul.mubr.f32.gmra.mxu0 %v95
    %v198 = vpop.f32.mrf.mxu0
    %v199 = vadd.f32 %v70, %v198
    %v200 = vpop.f32.mrf.mxu0
    %201 = vdwg.mxu0
    %vm202 = vcmask 523264
    %203 = vst.msk [vmem:[#allocation2] sm:$0xff] %vm202, %v164
    %204 = vst.msk [vmem:[#allocation2 + $0x8] sm:$0xff] %vm202, %v169
    %205 = vst.msk [vmem:[#allocation2 + $0x10] sm:$0xff] %vm202, %v174
    %206 = vst.msk [vmem:[#allocation2 + $0x18] sm:$0xff] %vm202, %v179
    %207 = vst.msk [vmem:[#allocation2 + $0x20] sm:$0xff] %vm202, %v184
    %208 = vst.msk [vmem:[#allocation2 + $0x28] sm:$0xff] %vm202, %v189
    %209 = vst.msk [vmem:[#allocation2 + $0x30] sm:$0xff] %vm202, %v194
    %210 = vst.msk [vmem:[#allocation2 + $0x38] sm:$0xff] %vm202, %v199
    %v211 = vld [vmem:[#allocation2] sm:$0xff]
    %vm212 = vcmask 261120
    %v214 = vsel %vm212, 0.0, 0
    %216 = vmatprep.subr.mxu0 0.0
    %217 = vmatpush1.msra.mxu0 0.0
    %218 = vmatprep.subr.mxu0 0.0
    %219 = vmatpush1.msra.mxu0 0.0
    %220 = vmatprep.subr.mxu0 0.0
    %221 = vmatpush1.msra.mxu0 0.0
    %222 = vmatprep.subr.mxu0 0.0
    %223 = vmatpush1.msra.mxu0 0.0
    %224 = vmatprep.subr.mxu0 0.0
    %225 = vmatpush1.msra.mxu0 0.0
    %226 = vmatprep.subr.mxu0 0.0
    %227 = vmatpush1.msra.mxu0 0.0
    %228 = vmatprep.subr.mxu0 0.0
    %229 = vmatpush1.msra.mxu0 0.0
    %230 = vmatprep.subr.mxu0 0.0
    %231 = vmatpush1.msra.mxu0 0.0
    %232 = vmatprep.subr.mxu0 0.0
    %233 = vmatpush1.msra.mxu0 0.0
    %234 = vmatprep.subr.mxu0 0.0
    %235 = vmatpush1.msra.mxu0 0.0
    %236 = vmatprep.subr.mxu0 0.0
    %237 = vmatpush1.msra.mxu0 0.0
    %238 = vmatprep.subr.mxu0 0.0
    %239 = vmatpush1.msra.mxu0 0.0
    %240 = vmatprep.subr.mxu0 0.0
    %241 = vmatpush1.msra.mxu0 %v54
    %242 = vmatprep.subr.mxu0 0.0
    %243 = vmatpush1.msra.mxu0 %v53
    %244 = vmatprep.subr.mxu0 0.0
    %245 = vmatpush1.msra.mxu0 %v52
    %246 = vmatprep.subr.mxu0 0.0
    %247 = vmatpush1.msra.mxu0 %v51
    %248 = vmatprep.subr.mxu0 0.0
    %249 = vmatpush2.msra.mxu0 0.0
    %250 = vmatprep.subr.mxu0 0.0
    %251 = vmatpush2.msra.mxu0 0.0
    %252 = vmatprep.subr.mxu0 0.0
    %253 = vmatpush2.msra.mxu0 0.0
    %254 = vmatprep.subr.mxu0 0.0
    %255 = vmatpush2.msra.mxu0 0.0
    %256 = vmatprep.subr.mxu0 0.0
    %257 = vmatpush2.msra.mxu0 0.0
    %258 = vmatprep.subr.mxu0 0.0
    %259 = vmatpush2.msra.mxu0 0.0
    %260 = vmatprep.subr.mxu0 0.0
    %261 = vmatpush2.msra.mxu0 0.0
    %262 = vmatprep.subr.mxu0 0.0
    %263 = vmatpush2.msra.mxu0 0.0
    %264 = vmatprep.subr.mxu0 0.0
    %265 = vmatpush2.msra.mxu0 0.0
    %266 = vmatprep.subr.mxu0 0.0
    %267 = vmatpush2.msra.mxu0 0.0
    %268 = vmatprep.subr.mxu0 0.0
    %269 = vmatpush2.msra.mxu0 0.0
    %270 = vmatprep.subr.mxu0 0.0
    %271 = vmatpush2.msra.mxu0 0.0
    %272 = vmatprep.subr.mxu0 0.0
    %273 = vmatpush2.msra.mxu0 0.0
    %274 = vmatprep.subr.mxu0 0.0
    %275 = vmatpush2.msra.mxu0 0.0
    %276 = vmatprep.subr.mxu0 0.0
    %277 = vmatpush2.msra.mxu0 0.0
    %278 = vmatprep.subr.mxu0 0.0
    %279 = vmatpush2.msra.mxu0 0.0
    %280 = vmatprep.mubr.f32.mxu0 0.0
    %281 = vmatmul.mubr.f32.gmra.mxu0 %v214
    %v282 = vpop.f32.mrf.mxu0
    %v283 = vadd.f32 0.0, %v282
    %v284 = vpop.f32.mrf.mxu0
    %285 = vdwg.mxu0
    %v286 = vadd.f32 %v211, %v283
    %v287 = vxor.u32 %v286, 2147483648
    %v288 = vmul.f32 %v287, 1.442695
    %v289 = vpow.pop %v288
    %v290 = vadd.f32 %v289, 1.0
    %v291 = vrcp.pop %v290
    %v292 = vmul.f32 1.0, %v291
    %v293 = vtanh.pop %v286
    %v294 = vmul.f32 %v292, 0.0
    %v295 = vsub.f32 1.0, %v292
    %297 = vrot.lane.b32.xlu0 %v293, 96
    %v298 = vpop.permute.xlu0 %297
    %v300 = vmul.f32 %v295, %v298
    %v301 = vadd.f32 %v294, %v300
    %v302 = vtanh.pop %v301
    %s303 = scalar_lea.vmem [#allocation2], 8
    %v304 = vld [vmem:[%s303] sm:$0xff]
    %v306 = vsel %vm212, %v302, 0
    %308 = vmatprep.subr.mxu0 0.0
    %309 = vmatpush1.msra.mxu0 0.0
    %310 = vmatprep.subr.mxu0 0.0
    %311 = vmatpush1.msra.mxu0 0.0
    %312 = vmatprep.subr.mxu0 0.0
    %313 = vmatpush1.msra.mxu0 0.0
    %314 = vmatprep.subr.mxu0 0.0
    %315 = vmatpush1.msra.mxu0 0.0
    %316 = vmatprep.subr.mxu0 0.0
    %317 = vmatpush1.msra.mxu0 0.0
    %318 = vmatprep.subr.mxu0 0.0
    %319 = vmatpush1.msra.mxu0 0.0
    %320 = vmatprep.subr.mxu0 0.0
    %321 = vmatpush1.msra.mxu0 0.0
    %322 = vmatprep.subr.mxu0 0.0
    %323 = vmatpush1.msra.mxu0 0.0
    %324 = vmatprep.subr.mxu0 0.0
    %325 = vmatpush1.msra.mxu0 0.0
    %326 = vmatprep.subr.mxu0 0.0
    %327 = vmatpush1.msra.mxu0 0.0
    %328 = vmatprep.subr.mxu0 0.0
    %329 = vmatpush1.msra.mxu0 0.0
    %330 = vmatprep.subr.mxu0 0.0
    %331 = vmatpush1.msra.mxu0 0.0
    %332 = vmatprep.subr.mxu0 0.0
    %333 = vmatpush1.msra.mxu0 %v54
    %334 = vmatprep.subr.mxu0 0.0
    %335 = vmatpush1.msra.mxu0 %v53
    %336 = vmatprep.subr.mxu0 0.0
    %337 = vmatpush1.msra.mxu0 %v52
    %338 = vmatprep.subr.mxu0 0.0
    %339 = vmatpush1.msra.mxu0 %v51
    %340 = vmatprep.subr.mxu0 0.0
    %341 = vmatpush2.msra.mxu0 0.0
    %342 = vmatprep.subr.mxu0 0.0
    %343 = vmatpush2.msra.mxu0 0.0
    %344 = vmatprep.subr.mxu0 0.0
    %345 = vmatpush2.msra.mxu0 0.0
    %346 = vmatprep.subr.mxu0 0.0
    %347 = vmatpush2.msra.mxu0 0.0
    %348 = vmatprep.subr.mxu0 0.0
    %349 = vmatpush2.msra.mxu0 0.0
    %350 = vmatprep.subr.mxu0 0.0
    %351 = vmatpush2.msra.mxu0 0.0
    %352 = vmatprep.subr.mxu0 0.0
    %353 = vmatpush2.msra.mxu0 0.0
    %354 = vmatprep.subr.mxu0 0.0
    %355 = vmatpush2.msra.mxu0 0.0
    %356 = vmatprep.subr.mxu0 0.0
    %357 = vmatpush2.msra.mxu0 0.0
    %358 = vmatprep.subr.mxu0 0.0
    %359 = vmatpush2.msra.mxu0 0.0
    %360 = vmatprep.subr.mxu0 0.0
    %361 = vmatpush2.msra.mxu0 0.0
    %362 = vmatprep.subr.mxu0 0.0
    %363 = vmatpush2.msra.mxu0 0.0
    %364 = vmatprep.subr.mxu0 0.0
    %365 = vmatpush2.msra.mxu0 0.0
    %366 = vmatprep.subr.mxu0 0.0
    %367 = vmatpush2.msra.mxu0 0.0
    %368 = vmatprep.subr.mxu0 0.0
    %369 = vmatpush2.msra.mxu0 0.0
    %370 = vmatprep.subr.mxu0 0.0
    %371 = vmatpush2.msra.mxu0 0.0
    %372 = vmatprep.mubr.f32.mxu0 0.0
    %373 = vmatmul.mubr.f32.gmra.mxu0 %v306
    %v374 = vpop.f32.mrf.mxu0
    %v375 = vadd.f32 0.0, %v374
    %v376 = vpop.f32.mrf.mxu0
    %377 = vdwg.mxu0
    %v378 = vadd.f32 %v304, %v375
    %v379 = vxor.u32 %v378, 2147483648
    %v380 = vmul.f32 %v379, 1.442695
    %v381 = vpow.pop %v380
    %v382 = vadd.f32 %v381, 1.0
    %v383 = vrcp.pop %v382
    %v384 = vmul.f32 1.0, %v383
    %v385 = vtanh.pop %v378
    %v386 = vmul.f32 %v384, %v301
    %v387 = vsub.f32 1.0, %v384
    %389 = vrot.lane.b32.xlu0 %v385, 96
    %v390 = vpop.permute.xlu0 %389
    %v392 = vmul.f32 %v387, %v390
    %v393 = vadd.f32 %v386, %v392
    %v394 = vtanh.pop %v393
    %s395 = scalar_lea.vmem [#allocation2], 16
    %v396 = vld [vmem:[%s395] sm:$0xff]
    %v398 = vsel %vm212, %v394, 0
    %400 = vmatprep.subr.mxu0 0.0
    %401 = vmatpush1.msra.mxu0 0.0
    %402 = vmatprep.subr.mxu0 0.0
    %403 = vmatpush1.msra.mxu0 0.0
    %404 = vmatprep.subr.mxu0 0.0
    %405 = vmatpush1.msra.mxu0 0.0
    %406 = vmatprep.subr.mxu0 0.0
    %407 = vmatpush1.msra.mxu0 0.0
    %408 = vmatprep.subr.mxu0 0.0
    %409 = vmatpush1.msra.mxu0 0.0
    %410 = vmatprep.subr.mxu0 0.0
    %411 = vmatpush1.msra.mxu0 0.0
    %412 = vmatprep.subr.mxu0 0.0
    %413 = vmatpush1.msra.mxu0 0.0
    %414 = vmatprep.subr.mxu0 0.0
    %415 = vmatpush1.msra.mxu0 0.0
    %416 = vmatprep.subr.mxu0 0.0
    %417 = vmatpush1.msra.mxu0 0.0
    %418 = vmatprep.subr.mxu0 0.0
    %419 = vmatpush1.msra.mxu0 0.0
    %420 = vmatprep.subr.mxu0 0.0
    %421 = vmatpush1.msra.mxu0 0.0
    %422 = vmatprep.subr.mxu0 0.0
    %423 = vmatpush1.msra.mxu0 0.0
    %424 = vmatprep.subr.mxu0 0.0
    %425 = vmatpush1.msra.mxu0 %v54
    %426 = vmatprep.subr.mxu0 0.0
    %427 = vmatpush1.msra.mxu0 %v53
    %428 = vmatprep.subr.mxu0 0.0
    %429 = vmatpush1.msra.mxu0 %v52
    %430 = vmatprep.subr.mxu0 0.0
    %431 = vmatpush1.msra.mxu0 %v51
    %432 = vmatprep.subr.mxu0 0.0
    %433 = vmatpush2.msra.mxu0 0.0
    %434 = vmatprep.subr.mxu0 0.0
    %435 = vmatpush2.msra.mxu0 0.0
    %436 = vmatprep.subr.mxu0 0.0
    %437 = vmatpush2.msra.mxu0 0.0
    %438 = vmatprep.subr.mxu0 0.0
    %439 = vmatpush2.msra.mxu0 0.0
    %440 = vmatprep.subr.mxu0 0.0
    %441 = vmatpush2.msra.mxu0 0.0
    %442 = vmatprep.subr.mxu0 0.0
    %443 = vmatpush2.msra.mxu0 0.0
    %444 = vmatprep.subr.mxu0 0.0
    %445 = vmatpush2.msra.mxu0 0.0
    %446 = vmatprep.subr.mxu0 0.0
    %447 = vmatpush2.msra.mxu0 0.0
    %448 = vmatprep.subr.mxu0 0.0
    %449 = vmatpush2.msra.mxu0 0.0
    %450 = vmatprep.subr.mxu0 0.0
    %451 = vmatpush2.msra.mxu0 0.0
    %452 = vmatprep.subr.mxu0 0.0
    %453 = vmatpush2.msra.mxu0 0.0
    %454 = vmatprep.subr.mxu0 0.0
    %455 = vmatpush2.msra.mxu0 0.0
    %456 = vmatprep.subr.mxu0 0.0
    %457 = vmatpush2.msra.mxu0 0.0
    %458 = vmatprep.subr.mxu0 0.0
    %459 = vmatpush2.msra.mxu0 0.0
    %460 = vmatprep.subr.mxu0 0.0
    %461 = vmatpush2.msra.mxu0 0.0
    %462 = vmatprep.subr.mxu0 0.0
    %463 = vmatpush2.msra.mxu0 0.0
    %464 = vmatprep.mubr.f32.mxu0 0.0
    %465 = vmatmul.mubr.f32.gmra.mxu0 %v398
    %v466 = vpop.f32.mrf.mxu0
    %v467 = vadd.f32 0.0, %v466
    %v468 = vpop.f32.mrf.mxu0
    %469 = vdwg.mxu0
    %v470 = vadd.f32 %v396, %v467
    %v471 = vxor.u32 %v470, 2147483648
    %v472 = vmul.f32 %v471, 1.442695
    %v473 = vpow.pop %v472
    %v474 = vadd.f32 %v473, 1.0
    %v475 = vrcp.pop %v474
    %v476 = vmul.f32 1.0, %v475
    %v477 = vtanh.pop %v470
    %v478 = vmul.f32 %v476, %v393
    %v479 = vsub.f32 1.0, %v476
    %481 = vrot.lane.b32.xlu0 %v477, 96
    %v482 = vpop.permute.xlu0 %481
    %v484 = vmul.f32 %v479, %v482
    %v485 = vadd.f32 %v478, %v484
    %v486 = vtanh.pop %v485
    %s487 = scalar_lea.vmem [#allocation2], 24
    %v488 = vld [vmem:[%s487] sm:$0xff]
    %v490 = vsel %vm212, %v486, 0
    %492 = vmatprep.subr.mxu0 0.0
    %493 = vmatpush1.msra.mxu0 0.0
    %494 = vmatprep.subr.mxu0 0.0
    %495 = vmatpush1.msra.mxu0 0.0
    %496 = vmatprep.subr.mxu0 0.0
    %497 = vmatpush1.msra.mxu0 0.0
    %498 = vmatprep.subr.mxu0 0.0
    %499 = vmatpush1.msra.mxu0 0.0
    %500 = vmatprep.subr.mxu0 0.0
    %501 = vmatpush1.msra.mxu0 0.0
    %502 = vmatprep.subr.mxu0 0.0
    %503 = vmatpush1.msra.mxu0 0.0
    %504 = vmatprep.subr.mxu0 0.0
    %505 = vmatpush1.msra.mxu0 0.0
    %506 = vmatprep.subr.mxu0 0.0
    %507 = vmatpush1.msra.mxu0 0.0
    %508 = vmatprep.subr.mxu0 0.0
    %509 = vmatpush1.msra.mxu0 0.0
    %510 = vmatprep.subr.mxu0 0.0
    %511 = vmatpush1.msra.mxu0 0.0
    %512 = vmatprep.subr.mxu0 0.0
    %513 = vmatpush1.msra.mxu0 0.0
    %514 = vmatprep.subr.mxu0 0.0
    %515 = vmatpush1.msra.mxu0 0.0
    %516 = vmatprep.subr.mxu0 0.0
    %517 = vmatpush1.msra.mxu0 %v54
    %518 = vmatprep.subr.mxu0 0.0
    %519 = vmatpush1.msra.mxu0 %v53
    %520 = vmatprep.subr.mxu0 0.0
    %521 = vmatpush1.msra.mxu0 %v52
    %522 = vmatprep.subr.mxu0 0.0
    %523 = vmatpush1.msra.mxu0 %v51
    %524 = vmatprep.subr.mxu0 0.0
    %525 = vmatpush2.msra.mxu0 0.0
    %526 = vmatprep.subr.mxu0 0.0
    %527 = vmatpush2.msra.mxu0 0.0
    %528 = vmatprep.subr.mxu0 0.0
    %529 = vmatpush2.msra.mxu0 0.0
    %530 = vmatprep.subr.mxu0 0.0
    %531 = vmatpush2.msra.mxu0 0.0
    %532 = vmatprep.subr.mxu0 0.0
    %533 = vmatpush2.msra.mxu0 0.0
    %534 = vmatprep.subr.mxu0 0.0
    %535 = vmatpush2.msra.mxu0 0.0
    %536 = vmatprep.subr.mxu0 0.0
    %537 = vmatpush2.msra.mxu0 0.0
    %538 = vmatprep.subr.mxu0 0.0
    %539 = vmatpush2.msra.mxu0 0.0
    %540 = vmatprep.subr.mxu0 0.0
    %541 = vmatpush2.msra.mxu0 0.0
    %542 = vmatprep.subr.mxu0 0.0
    %543 = vmatpush2.msra.mxu0 0.0
    %544 = vmatprep.subr.mxu0 0.0
    %545 = vmatpush2.msra.mxu0 0.0
    %546 = vmatprep.subr.mxu0 0.0
    %547 = vmatpush2.msra.mxu0 0.0
    %548 = vmatprep.subr.mxu0 0.0
    %549 = vmatpush2.msra.mxu0 0.0
    %550 = vmatprep.subr.mxu0 0.0
    %551 = vmatpush2.msra.mxu0 0.0
    %552 = vmatprep.subr.mxu0 0.0
    %553 = vmatpush2.msra.mxu0 0.0
    %554 = vmatprep.subr.mxu0 0.0
    %555 = vmatpush2.msra.mxu0 0.0
    %556 = vmatprep.mubr.f32.mxu0 0.0
    %557 = vmatmul.mubr.f32.gmra.mxu0 %v490
    %v558 = vpop.f32.mrf.mxu0
    %v559 = vadd.f32 0.0, %v558
    %v560 = vpop.f32.mrf.mxu0
    %561 = vdwg.mxu0
    %v562 = vadd.f32 %v488, %v559
    %v563 = vxor.u32 %v562, 2147483648
    %v564 = vmul.f32 %v563, 1.442695
    %v565 = vpow.pop %v564
    %v566 = vadd.f32 %v565, 1.0
    %v567 = vrcp.pop %v566
    %v568 = vmul.f32 1.0, %v567
    %v569 = vtanh.pop %v562
    %v570 = vmul.f32 %v568, %v485
    %v571 = vsub.f32 1.0, %v568
    %573 = vrot.lane.b32.xlu0 %v569, 96
    %v574 = vpop.permute.xlu0 %573
    %v576 = vmul.f32 %v571, %v574
    %v577 = vadd.f32 %v570, %v576
    %v578 = vtanh.pop %v577
    %s579 = scalar_lea.vmem [#allocation2], 32
    %v580 = vld [vmem:[%s579] sm:$0xff]
    %v582 = vsel %vm212, %v578, 0
    %584 = vmatprep.subr.mxu0 0.0
    %585 = vmatpush1.msra.mxu0 0.0
    %586 = vmatprep.subr.mxu0 0.0
    %587 = vmatpush1.msra.mxu0 0.0
    %588 = vmatprep.subr.mxu0 0.0
    %589 = vmatpush1.msra.mxu0 0.0
    %590 = vmatprep.subr.mxu0 0.0
    %591 = vmatpush1.msra.mxu0 0.0
    %592 = vmatprep.subr.mxu0 0.0
    %593 = vmatpush1.msra.mxu0 0.0
    %594 = vmatprep.subr.mxu0 0.0
    %595 = vmatpush1.msra.mxu0 0.0
    %596 = vmatprep.subr.mxu0 0.0
    %597 = vmatpush1.msra.mxu0 0.0
    %598 = vmatprep.subr.mxu0 0.0
    %599 = vmatpush1.msra.mxu0 0.0
    %600 = vmatprep.subr.mxu0 0.0
    %601 = vmatpush1.msra.mxu0 0.0
    %602 = vmatprep.subr.mxu0 0.0
    %603 = vmatpush1.msra.mxu0 0.0
    %604 = vmatprep.subr.mxu0 0.0
    %605 = vmatpush1.msra.mxu0 0.0
    %606 = vmatprep.subr.mxu0 0.0
    %607 = vmatpush1.msra.mxu0 0.0
    %608 = vmatprep.subr.mxu0 0.0
    %609 = vmatpush1.msra.mxu0 %v54
    %610 = vmatprep.subr.mxu0 0.0
    %611 = vmatpush1.msra.mxu0 %v53
    %612 = vmatprep.subr.mxu0 0.0
    %613 = vmatpush1.msra.mxu0 %v52
    %614 = vmatprep.subr.mxu0 0.0
    %615 = vmatpush1.msra.mxu0 %v51
    %616 = vmatprep.subr.mxu0 0.0
    %617 = vmatpush2.msra.mxu0 0.0
    %618 = vmatprep.subr.mxu0 0.0
    %619 = vmatpush2.msra.mxu0 0.0
    %620 = vmatprep.subr.mxu0 0.0
    %621 = vmatpush2.msra.mxu0 0.0
    %622 = vmatprep.subr.mxu0 0.0
    %623 = vmatpush2.msra.mxu0 0.0
    %624 = vmatprep.subr.mxu0 0.0
    %625 = vmatpush2.msra.mxu0 0.0
    %626 = vmatprep.subr.mxu0 0.0
    %627 = vmatpush2.msra.mxu0 0.0
    %628 = vmatprep.subr.mxu0 0.0
    %629 = vmatpush2.msra.mxu0 0.0
    %630 = vmatprep.subr.mxu0 0.0
    %631 = vmatpush2.msra.mxu0 0.0
    %632 = vmatprep.subr.mxu0 0.0
    %633 = vmatpush2.msra.mxu0 0.0
    %634 = vmatprep.subr.mxu0 0.0
    %635 = vmatpush2.msra.mxu0 0.0
    %636 = vmatprep.subr.mxu0 0.0
    %637 = vmatpush2.msra.mxu0 0.0
    %638 = vmatprep.subr.mxu0 0.0
    %639 = vmatpush2.msra.mxu0 0.0
    %640 = vmatprep.subr.mxu0 0.0
    %641 = vmatpush2.msra.mxu0 0.0
    %642 = vmatprep.subr.mxu0 0.0
    %643 = vmatpush2.msra.mxu0 0.0
    %644 = vmatprep.subr.mxu0 0.0
    %645 = vmatpush2.msra.mxu0 0.0
    %646 = vmatprep.subr.mxu0 0.0
    %647 = vmatpush2.msra.mxu0 0.0
    %648 = vmatprep.mubr.f32.mxu0 0.0
    %649 = vmatmul.mubr.f32.gmra.mxu0 %v582
    %v650 = vpop.f32.mrf.mxu0
    %v651 = vadd.f32 0.0, %v650
    %v652 = vpop.f32.mrf.mxu0
    %653 = vdwg.mxu0
    %v654 = vadd.f32 %v580, %v651
    %v655 = vxor.u32 %v654, 2147483648
    %v656 = vmul.f32 %v655, 1.442695
    %v657 = vpow.pop %v656
    %v658 = vadd.f32 %v657, 1.0
    %v659 = vrcp.pop %v658
    %v660 = vmul.f32 1.0, %v659
    %v661 = vtanh.pop %v654
    %v662 = vmul.f32 %v660, %v577
    %v663 = vsub.f32 1.0, %v660
    %665 = vrot.lane.b32.xlu0 %v661, 96
    %v666 = vpop.permute.xlu0 %665
    %v668 = vmul.f32 %v663, %v666
    %v669 = vadd.f32 %v662, %v668
    %v670 = vtanh.pop %v669
    %s671 = scalar_lea.vmem [#allocation2], 40
    %v672 = vld [vmem:[%s671] sm:$0xff]
    %v674 = vsel %vm212, %v670, 0
    %676 = vmatprep.subr.mxu0 0.0
    %677 = vmatpush1.msra.mxu0 0.0
    %678 = vmatprep.subr.mxu0 0.0
    %679 = vmatpush1.msra.mxu0 0.0
    %680 = vmatprep.subr.mxu0 0.0
    %681 = vmatpush1.msra.mxu0 0.0
    %682 = vmatprep.subr.mxu0 0.0
    %683 = vmatpush1.msra.mxu0 0.0
    %684 = vmatprep.subr.mxu0 0.0
    %685 = vmatpush1.msra.mxu0 0.0
    %686 = vmatprep.subr.mxu0 0.0
    %687 = vmatpush1.msra.mxu0 0.0
    %688 = vmatprep.subr.mxu0 0.0
    %689 = vmatpush1.msra.mxu0 0.0
    %690 = vmatprep.subr.mxu0 0.0
    %691 = vmatpush1.msra.mxu0 0.0
    %692 = vmatprep.subr.mxu0 0.0
    %693 = vmatpush1.msra.mxu0 0.0
    %694 = vmatprep.subr.mxu0 0.0
    %695 = vmatpush1.msra.mxu0 0.0
    %696 = vmatprep.subr.mxu0 0.0
    %697 = vmatpush1.msra.mxu0 0.0
    %698 = vmatprep.subr.mxu0 0.0
    %699 = vmatpush1.msra.mxu0 0.0
    %700 = vmatprep.subr.mxu0 0.0
    %701 = vmatpush1.msra.mxu0 %v54
    %702 = vmatprep.subr.mxu0 0.0
    %703 = vmatpush1.msra.mxu0 %v53
    %704 = vmatprep.subr.mxu0 0.0
    %705 = vmatpush1.msra.mxu0 %v52
    %706 = vmatprep.subr.mxu0 0.0
    %707 = vmatpush1.msra.mxu0 %v51
    %708 = vmatprep.subr.mxu0 0.0
    %709 = vmatpush2.msra.mxu0 0.0
    %710 = vmatprep.subr.mxu0 0.0
    %711 = vmatpush2.msra.mxu0 0.0
    %712 = vmatprep.subr.mxu0 0.0
    %713 = vmatpush2.msra.mxu0 0.0
    %714 = vmatprep.subr.mxu0 0.0
    %715 = vmatpush2.msra.mxu0 0.0
    %716 = vmatprep.subr.mxu0 0.0
    %717 = vmatpush2.msra.mxu0 0.0
    %718 = vmatprep.subr.mxu0 0.0
    %719 = vmatpush2.msra.mxu0 0.0
    %720 = vmatprep.subr.mxu0 0.0
    %721 = vmatpush2.msra.mxu0 0.0
    %722 = vmatprep.subr.mxu0 0.0
    %723 = vmatpush2.msra.mxu0 0.0
    %724 = vmatprep.subr.mxu0 0.0
    %725 = vmatpush2.msra.mxu0 0.0
    %726 = vmatprep.subr.mxu0 0.0
    %727 = vmatpush2.msra.mxu0 0.0
    %728 = vmatprep.subr.mxu0 0.0
    %729 = vmatpush2.msra.mxu0 0.0
    %730 = vmatprep.subr.mxu0 0.0
    %731 = vmatpush2.msra.mxu0 0.0
    %732 = vmatprep.subr.mxu0 0.0
    %733 = vmatpush2.msra.mxu0 0.0
    %734 = vmatprep.subr.mxu0 0.0
    %735 = vmatpush2.msra.mxu0 0.0
    %736 = vmatprep.subr.mxu0 0.0
    %737 = vmatpush2.msra.mxu0 0.0
    %738 = vmatprep.subr.mxu0 0.0
    %739 = vmatpush2.msra.mxu0 0.0
    %740 = vmatprep.mubr.f32.mxu0 0.0
    %741 = vmatmul.mubr.f32.gmra.mxu0 %v674
    %v742 = vpop.f32.mrf.mxu0
    %v743 = vadd.f32 0.0, %v742
    %v744 = vpop.f32.mrf.mxu0
    %745 = vdwg.mxu0
    %v746 = vadd.f32 %v672, %v743
    %v747 = vxor.u32 %v746, 2147483648
    %v748 = vmul.f32 %v747, 1.442695
    %v749 = vpow.pop %v748
    %v750 = vadd.f32 %v749, 1.0
    %v751 = vrcp.pop %v750
    %v752 = vmul.f32 1.0, %v751
    %v753 = vtanh.pop %v746
    %v754 = vmul.f32 %v752, %v669
    %v755 = vsub.f32 1.0, %v752
    %757 = vrot.lane.b32.xlu0 %v753, 96
    %v758 = vpop.permute.xlu0 %757
    %v760 = vmul.f32 %v755, %v758
    %v761 = vadd.f32 %v754, %v760
    %v762 = vtanh.pop %v761
    %s763 = scalar_lea.vmem [#allocation2], 48
    %v764 = vld [vmem:[%s763] sm:$0xff]
    %v766 = vsel %vm212, %v762, 0
    %768 = vmatprep.subr.mxu0 0.0
    %769 = vmatpush1.msra.mxu0 0.0
    %770 = vmatprep.subr.mxu0 0.0
    %771 = vmatpush1.msra.mxu0 0.0
    %772 = vmatprep.subr.mxu0 0.0
    %773 = vmatpush1.msra.mxu0 0.0
    %774 = vmatprep.subr.mxu0 0.0
    %775 = vmatpush1.msra.mxu0 0.0
    %776 = vmatprep.subr.mxu0 0.0
    %777 = vmatpush1.msra.mxu0 0.0
    %778 = vmatprep.subr.mxu0 0.0
    %779 = vmatpush1.msra.mxu0 0.0
    %780 = vmatprep.subr.mxu0 0.0
    %781 = vmatpush1.msra.mxu0 0.0
    %782 = vmatprep.subr.mxu0 0.0
    %783 = vmatpush1.msra.mxu0 0.0
    %784 = vmatprep.subr.mxu0 0.0
    %785 = vmatpush1.msra.mxu0 0.0
    %786 = vmatprep.subr.mxu0 0.0
    %787 = vmatpush1.msra.mxu0 0.0
    %788 = vmatprep.subr.mxu0 0.0
    %789 = vmatpush1.msra.mxu0 0.0
    %790 = vmatprep.subr.mxu0 0.0
    %791 = vmatpush1.msra.mxu0 0.0
    %792 = vmatprep.subr.mxu0 0.0
    %793 = vmatpush1.msra.mxu0 %v54
    %794 = vmatprep.subr.mxu0 0.0
    %795 = vmatpush1.msra.mxu0 %v53
    %796 = vmatprep.subr.mxu0 0.0
    %797 = vmatpush1.msra.mxu0 %v52
    %798 = vmatprep.subr.mxu0 0.0
    %799 = vmatpush1.msra.mxu0 %v51
    %800 = vmatprep.subr.mxu0 0.0
    %801 = vmatpush2.msra.mxu0 0.0
    %802 = vmatprep.subr.mxu0 0.0
    %803 = vmatpush2.msra.mxu0 0.0
    %804 = vmatprep.subr.mxu0 0.0
    %805 = vmatpush2.msra.mxu0 0.0
    %806 = vmatprep.subr.mxu0 0.0
    %807 = vmatpush2.msra.mxu0 0.0
    %808 = vmatprep.subr.mxu0 0.0
    %809 = vmatpush2.msra.mxu0 0.0
    %810 = vmatprep.subr.mxu0 0.0
    %811 = vmatpush2.msra.mxu0 0.0
    %812 = vmatprep.subr.mxu0 0.0
    %813 = vmatpush2.msra.mxu0 0.0
    %814 = vmatprep.subr.mxu0 0.0
    %815 = vmatpush2.msra.mxu0 0.0
    %816 = vmatprep.subr.mxu0 0.0
    %817 = vmatpush2.msra.mxu0 0.0
    %818 = vmatprep.subr.mxu0 0.0
    %819 = vmatpush2.msra.mxu0 0.0
    %820 = vmatprep.subr.mxu0 0.0
    %821 = vmatpush2.msra.mxu0 0.0
    %822 = vmatprep.subr.mxu0 0.0
    %823 = vmatpush2.msra.mxu0 0.0
    %824 = vmatprep.subr.mxu0 0.0
    %825 = vmatpush2.msra.mxu0 0.0
    %826 = vmatprep.subr.mxu0 0.0
    %827 = vmatpush2.msra.mxu0 0.0
    %828 = vmatprep.subr.mxu0 0.0
    %829 = vmatpush2.msra.mxu0 0.0
    %830 = vmatprep.subr.mxu0 0.0
    %831 = vmatpush2.msra.mxu0 0.0
    %832 = vmatprep.mubr.f32.mxu0 0.0
    %833 = vmatmul.mubr.f32.gmra.mxu0 %v766
    %v834 = vpop.f32.mrf.mxu0
    %v835 = vadd.f32 0.0, %v834
    %v836 = vpop.f32.mrf.mxu0
    %837 = vdwg.mxu0
    %v838 = vadd.f32 %v764, %v835
    %v839 = vxor.u32 %v838, 2147483648
    %v840 = vmul.f32 %v839, 1.442695
    %v841 = vpow.pop %v840
    %v842 = vadd.f32 %v841, 1.0
    %v843 = vrcp.pop %v842
    %v844 = vmul.f32 1.0, %v843
    %v845 = vtanh.pop %v838
    %v846 = vmul.f32 %v844, %v761
    %v847 = vsub.f32 1.0, %v844
    %849 = vrot.lane.b32.xlu0 %v845, 96
    %v850 = vpop.permute.xlu0 %849
    %v852 = vmul.f32 %v847, %v850
    %v853 = vadd.f32 %v846, %v852
    %v854 = vtanh.pop %v853
    %s855 = scalar_lea.vmem [#allocation2], 56
    %v856 = vld [vmem:[%s855] sm:$0xff]
    %v858 = vsel %vm212, %v854, 0
    %860 = vmatprep.subr.mxu0 0.0
    %861 = vmatpush1.msra.mxu0 0.0
    %862 = vmatprep.subr.mxu0 0.0
    %863 = vmatpush1.msra.mxu0 0.0
    %864 = vmatprep.subr.mxu0 0.0
    %865 = vmatpush1.msra.mxu0 0.0
    %866 = vmatprep.subr.mxu0 0.0
    %867 = vmatpush1.msra.mxu0 0.0
    %868 = vmatprep.subr.mxu0 0.0
    %869 = vmatpush1.msra.mxu0 0.0
    %870 = vmatprep.subr.mxu0 0.0
    %871 = vmatpush1.msra.mxu0 0.0
    %872 = vmatprep.subr.mxu0 0.0
    %873 = vmatpush1.msra.mxu0 0.0
    %874 = vmatprep.subr.mxu0 0.0
    %875 = vmatpush1.msra.mxu0 0.0
    %876 = vmatprep.subr.mxu0 0.0
    %877 = vmatpush1.msra.mxu0 0.0
    %878 = vmatprep.subr.mxu0 0.0
    %879 = vmatpush1.msra.mxu0 0.0
    %880 = vmatprep.subr.mxu0 0.0
    %881 = vmatpush1.msra.mxu0 0.0
    %882 = vmatprep.subr.mxu0 0.0
    %883 = vmatpush1.msra.mxu0 0.0
    %884 = vmatprep.subr.mxu0 0.0
    %885 = vmatpush1.msra.mxu0 %v54
    %886 = vmatprep.subr.mxu0 0.0
    %887 = vmatpush1.msra.mxu0 %v53
    %888 = vmatprep.subr.mxu0 0.0
    %889 = vmatpush1.msra.mxu0 %v52
    %890 = vmatprep.subr.mxu0 0.0
    %891 = vmatpush1.msra.mxu0 %v51
    %892 = vmatprep.subr.mxu0 0.0
    %893 = vmatpush2.msra.mxu0 0.0
    %894 = vmatprep.subr.mxu0 0.0
    %895 = vmatpush2.msra.mxu0 0.0
    %896 = vmatprep.subr.mxu0 0.0
    %897 = vmatpush2.msra.mxu0 0.0
    %898 = vmatprep.subr.mxu0 0.0
    %899 = vmatpush2.msra.mxu0 0.0
    %900 = vmatprep.subr.mxu0 0.0
    %901 = vmatpush2.msra.mxu0 0.0
    %902 = vmatprep.subr.mxu0 0.0
    %903 = vmatpush2.msra.mxu0 0.0
    %904 = vmatprep.subr.mxu0 0.0
    %905 = vmatpush2.msra.mxu0 0.0
    %906 = vmatprep.subr.mxu0 0.0
    %907 = vmatpush2.msra.mxu0 0.0
    %908 = vmatprep.subr.mxu0 0.0
    %909 = vmatpush2.msra.mxu0 0.0
    %910 = vmatprep.subr.mxu0 0.0
    %911 = vmatpush2.msra.mxu0 0.0
    %912 = vmatprep.subr.mxu0 0.0
    %913 = vmatpush2.msra.mxu0 0.0
    %914 = vmatprep.subr.mxu0 0.0
    %915 = vmatpush2.msra.mxu0 0.0
    %916 = vmatprep.subr.mxu0 0.0
    %917 = vmatpush2.msra.mxu0 0.0
    %918 = vmatprep.subr.mxu0 0.0
    %919 = vmatpush2.msra.mxu0 0.0
    %920 = vmatprep.subr.mxu0 0.0
    %921 = vmatpush2.msra.mxu0 0.0
    %922 = vmatprep.subr.mxu0 0.0
    %923 = vmatpush2.msra.mxu0 0.0
    %924 = vmatprep.mubr.f32.mxu0 0.0
    %925 = vmatmul.mubr.f32.gmra.mxu0 %v858
    %v926 = vpop.f32.mrf.mxu0
    %v927 = vadd.f32 0.0, %v926
    %v928 = vpop.f32.mrf.mxu0
    %929 = vdwg.mxu0
    %v930 = vadd.f32 %v856, %v927
    %v931 = vxor.u32 %v930, 2147483648
    %v932 = vmul.f32 %v931, 1.442695
    %v933 = vpow.pop %v932
    %v934 = vadd.f32 %v933, 1.0
    %v935 = vrcp.pop %v934
    %v936 = vmul.f32 1.0, %v935
    %v937 = vtanh.pop %v930
    %v938 = vmul.f32 %v936, %v853
    %v939 = vsub.f32 1.0, %v936
    %941 = vrot.lane.b32.xlu0 %v937, 96
    %v942 = vpop.permute.xlu0 %941
    %v944 = vmul.f32 %v939, %v942
    %v945 = vadd.f32 %v938, %v944
    %v946 = vtanh.pop %v945
    %v947 = vld [vmem:[%s4] sm:$0xff]
    %v948 = vld [vmem:[%s4 + $0x8] sm:$0xff]
    %v949 = vld [vmem:[%s4 + $0x10] sm:$0xff]
    %v950 = vld [vmem:[%s4 + $0x18] sm:$0xff]
    %v951 = vld [vmem:[%s5] sm:$0x1]
    %v953 = vlaneseq
    %v954 = vshrl.u32 %v953, 7
    %v955 = vsub.s32 0, %v954
    %v956 = vrot.slane %v951, %v955
    %v959 = vsel %vm212, %v946, 0
    %961 = vmatprep.subr.mxu0 0.0
    %962 = vmatpush1.msra.mxu0 0.0
    %963 = vmatprep.subr.mxu0 0.0
    %964 = vmatpush1.msra.mxu0 0.0
    %965 = vmatprep.subr.mxu0 0.0
    %966 = vmatpush1.msra.mxu0 0.0
    %967 = vmatprep.subr.mxu0 0.0
    %968 = vmatpush1.msra.mxu0 0.0
    %969 = vmatprep.subr.mxu0 0.0
    %970 = vmatpush1.msra.mxu0 0.0
    %971 = vmatprep.subr.mxu0 0.0
    %972 = vmatpush1.msra.mxu0 0.0
    %973 = vmatprep.subr.mxu0 0.0
    %974 = vmatpush1.msra.mxu0 0.0
    %975 = vmatprep.subr.mxu0 0.0
    %976 = vmatpush1.msra.mxu0 0.0
    %977 = vmatprep.subr.mxu0 0.0
    %978 = vmatpush1.msra.mxu0 0.0
    %979 = vmatprep.subr.mxu0 0.0
    %980 = vmatpush1.msra.mxu0 0.0
    %981 = vmatprep.subr.mxu0 0.0
    %982 = vmatpush1.msra.mxu0 0.0
    %983 = vmatprep.subr.mxu0 0.0
    %984 = vmatpush1.msra.mxu0 0.0
    %985 = vmatprep.subr.mxu0 0.0
    %986 = vmatpush1.msra.mxu0 %v950
    %987 = vmatprep.subr.mxu0 0.0
    %988 = vmatpush1.msra.mxu0 %v949
    %989 = vmatprep.subr.mxu0 0.0
    %990 = vmatpush1.msra.mxu0 %v948
    %991 = vmatprep.subr.mxu0 0.0
    %992 = vmatpush1.msra.mxu0 %v947
    %993 = vmatprep.subr.mxu0 0.0
    %994 = vmatpush2.msra.mxu0 0.0
    %995 = vmatprep.subr.mxu0 0.0
    %996 = vmatpush2.msra.mxu0 0.0
    %997 = vmatprep.subr.mxu0 0.0
    %998 = vmatpush2.msra.mxu0 0.0
    %999 = vmatprep.subr.mxu0 0.0
    %1000 = vmatpush2.msra.mxu0 0.0
    %1001 = vmatprep.subr.mxu0 0.0
    %1002 = vmatpush2.msra.mxu0 0.0
    %1003 = vmatprep.subr.mxu0 0.0
    %1004 = vmatpush2.msra.mxu0 0.0
    %1005 = vmatprep.subr.mxu0 0.0
    %1006 = vmatpush2.msra.mxu0 0.0
    %1007 = vmatprep.subr.mxu0 0.0
    %1008 = vmatpush2.msra.mxu0 0.0
    %1009 = vmatprep.subr.mxu0 0.0
    %1010 = vmatpush2.msra.mxu0 0.0
    %1011 = vmatprep.subr.mxu0 0.0
    %1012 = vmatpush2.msra.mxu0 0.0
    %1013 = vmatprep.subr.mxu0 0.0
    %1014 = vmatpush2.msra.mxu0 0.0
    %1015 = vmatprep.subr.mxu0 0.0
    %1016 = vmatpush2.msra.mxu0 0.0
    %1017 = vmatprep.subr.mxu0 0.0
    %1018 = vmatpush2.msra.mxu0 0.0
    %1019 = vmatprep.subr.mxu0 0.0
    %1020 = vmatpush2.msra.mxu0 0.0
    %1021 = vmatprep.subr.mxu0 0.0
    %1022 = vmatpush2.msra.mxu0 0.0
    %1023 = vmatprep.subr.mxu0 0.0
    %1024 = vmatpush2.msra.mxu0 0.0
    %1025 = vmatprep.mubr.f32.mxu0 0.0
    %1026 = vmatmul.mubr.f32.gmra.mxu0 %v959
    %v1027 = vpop.f32.mrf.mxu0
    %v1028 = vadd.f32 %v956, %v1027
    %v1029 = vpop.f32.mrf.mxu0
    %1030 = vdwg.mxu0
    %vm1031 = vcmask 31744
    %1032 = vst.msk [vmem:[%s6] sm:$0xff] %vm1031, %v1028
    // Predicated region
    $region34: #{tpu_custom_call.1} parent=1 // pred_check
      _
    $region35: #{tpu_custom_call.1} parent=1 // pred_check_branch
      %1034 = sbr.rel (0) target = $region37
    $region36: #{tpu_custom_call.1} parent=1 // pred_region
      _
    $region37: #{tpu_custom_call.1} parent=1 // pred_fallthru
      _
    // Predicated region
    $region38: #{tpu_custom_call.1} parent=1 // pred_check
      _
    $region39: #{tpu_custom_call.1} parent=1 // pred_check_branch
      %1036 = sbr.rel (0) target = $region41
    $region40: #{tpu_custom_call.1} parent=1 // pred_region
      _
    $region41: #{tpu_custom_call.1} parent=1 // pred_fallthru
      _
    %1037 = vsyncpa [#allocation4], 1
    %1038 = vsyncpa [#allocation6], 1

</llo_original>
